<compile_context>
chip_gen: v7x
topology: tpu7x:2x2x1
jax: 0.10.0
libtpu: 0.0.40
codegen_flags: <defaults>
</compile_context>

<pallas_src>
import jax
import jax.numpy as jnp
from jax.experimental import pallas as pl
from jax.experimental.pallas import tpu as pltpu


def _token_kernel(pm_ref, w1t_ref, b1_ref, gamma_ref, beta_ref,
                  w2t_ref, b2_ref, pn_ref, mt_ref, out_ref):
    """Per-token pipeline, transposed: features on sublanes, tokens on lanes."""
    x = pm_ref[0]                                                       # (PP, TM)
    # mlp1: (D2, PP) @ (PP, TM) -> (D2, TM)
    h1 = jnp.dot(w1t_ref[...], x, preferred_element_type=jnp.float32) + b1_ref[...]
    # LayerNorm(eps=1e-5) over the feature (sublane) axis, biased variance.
    mu = jnp.mean(h1, axis=0, keepdims=True)
    var = jnp.mean((h1 - mu) ** 2, axis=0, keepdims=True)
    h1n = (h1 - mu) * jax.lax.rsqrt(var + 1e-5) * gamma_ref[...] + beta_ref[...]
    # mlp2: (D, D2) @ (D2, TM) -> (D, TM)
    h2 = jnp.dot(w2t_ref[...], h1n, preferred_element_type=jnp.float32) + b2_ref[...]
    # softmax over the feature axis, then self-gate.
    m = jnp.max(h2, axis=0, keepdims=True)
    e = jnp.exp(h2 - m)
    attn = e * pl.reciprocal(jnp.sum(e, axis=0, keepdims=True), approx=True)
    lo = h2 * attn
    # cosine similarity with the pre-L2-normalized prompt (F.normalize eps=1e-12).
    inv_norm = jax.lax.rsqrt(
        jnp.maximum(jnp.sum(lo * lo, axis=0, keepdims=True), 1e-24))
    cos = jnp.sum(lo * pn_ref[...], axis=0, keepdims=True) * inv_norm
    lo = lo * jnp.clip(cos, 0.0, 1.0)
    # fused top_down_transform + 1x1-conv weight: (D, D) @ (D, TM) -> (D, TM)
    out_ref[0] = jnp.dot(mt_ref[...], lo, preferred_element_type=jnp.float32)


def _upsample_conv_kernel(tok_ref, rh_ref, rwt_ref, bc_ref, out_ref):
    """Separable bilinear upsample of a (DC, Hp, Wp) channel block onto a
    (DC, HB, W) output row band, plus the fused 1x1-conv bias (the conv weight
    was already folded into kernel 1).  Output is written NCHW."""
    DC = tok_ref.shape[1]                                               # static
    dci = pl.program_id(1)                                              # channel group
    rh = rh_ref[...]                                                    # (HB, Hp)
    rwt = rwt_ref[...]                                                  # (Wp, W)
    for d in range(DC):                                                 # static, small
        # W-pass: (Hp, Wp) @ (Wp, W) -> (Hp, W)
        tmp = jnp.dot(tok_ref[0, d], rwt, preferred_element_type=jnp.float32)
        # H-pass: (HB, Hp) @ (Hp, W) -> (HB, W)
        up = jnp.dot(rh, tmp, preferred_element_type=jnp.float32)
        out_ref[0, d] = up + bc_ref[dci * DC + d]                       # + conv bias


def _interp_matrix(out_size, in_size):
    """Rows = output pixels, cols = input pixels; PyTorch bilinear,
    align_corners=False semantics."""
    dst = jnp.arange(out_size, dtype=jnp.float32)
    scale = in_size / out_size
    src = (dst + 0.5) * scale - 0.5
    src = jnp.maximum(src, 0.0)
    i0 = jnp.minimum(jnp.floor(src).astype(jnp.int32), in_size - 1)
    i1 = jnp.minimum(i0 + 1, in_size - 1)
    w1 = src - i0.astype(jnp.float32)
    w0 = 1.0 - w1
    oh0 = jax.nn.one_hot(i0, in_size, dtype=jnp.float32)
    oh1 = jax.nn.one_hot(i1, in_size, dtype=jnp.float32)
    return w0[:, None] * oh0 + w1[:, None] * oh1


def _round_up(a, b):
    return ((a + b - 1) // b) * b


def _pick_channel_block(D, cap=8):
    """Largest divisor of D that is <= cap, preferring >= 2 channel tiles."""
    divisors = [c for c in range(1, min(D, cap) + 1) if D % c == 0]
    for c in reversed(divisors):
        if D // c >= 2:
            return c
    return divisors[-1]


def _pick_row_block(H, cap=128):
    """Output row-band height: full H if small, else a mult-of-8 divisor <= cap."""
    if H <= cap:
        return H
    for hb in range(cap, 7, -1):
        if H % hb == 0 and hb % 8 == 0:
            return hb
    return H


def local_global_attention(x, params, patch_size, output_dim):
    B, C, H, W = x.shape
    P = patch_size
    Hp, Wp = H // P, W // P
    PP = P * P
    D = output_dim
    D2 = D // 2
    N = Hp * Wp

    # ---- patch-mean prologue: one pass over x in native NCHW.  torch's
    #      scrambled reshape(B,-1,P*P,C).mean(-1) == strided VALID conv whose
    #      p-th output channel averages the p-th group of C consecutive
    #      elements of the flattened (c, i, j) axis.  Output lands directly in
    #      the (B, PP, N) layout kernel 1 wants (no transpose chain over x).
    u = jnp.arange(C * PP)
    sel = (u[:, None] // C == jnp.arange(PP)[None, :]).astype(jnp.float32)  # (C*PP, PP)
    kern = sel.T.reshape(PP, C, P, P)
    pm = jax.lax.conv_general_dilated(
        x.astype(jnp.float32), kern, window_strides=(P, P), padding="VALID",
        dimension_numbers=("NCHW", "OIHW", "NCHW"),
        precision=jax.lax.Precision.HIGHEST) * (1.0 / C)                # (B, PP, Hp, Wp)
    pm = pm.reshape(B, PP, N)

    # Token tile swept up from 512 -> 2048 (per the perf review), per batch.
    TM = min(2048, _round_up(N, 128))
    Npad = _round_up(N, TM)
    if Npad != N:
        pm = jnp.pad(pm, ((0, 0), (0, 0), (0, Npad - N)))

    # Fused final transform: (lo @ tdt) @ conv_w.T  ==  (conv_w @ tdt.T) @ lo_col.
    mt = (params["conv_w"] @ params["tdt"].T).astype(jnp.float32)       # (D, D)
    # Prompt L2 normalization hoisted out of the kernel.
    pn = params["prompt"] / jnp.maximum(jnp.linalg.norm(params["prompt"]), 1e-12)

    col = lambda v: jnp.asarray(v, jnp.float32).reshape(-1, 1)

    tok = pl.pallas_call(
        _token_kernel,
        out_shape=jax.ShapeDtypeStruct((B, D, Npad), jnp.float32),
        grid=(B, Npad // TM),
        in_specs=[
            pl.BlockSpec((1, PP, TM), lambda b, i: (b, 0, i)),
            pl.BlockSpec((D2, PP), lambda b, i: (0, 0)),
            pl.BlockSpec((D2, 1), lambda b, i: (0, 0)),
            pl.BlockSpec((D2, 1), lambda b, i: (0, 0)),
            pl.BlockSpec((D2, 1), lambda b, i: (0, 0)),
            pl.BlockSpec((D, D2), lambda b, i: (0, 0)),
            pl.BlockSpec((D, 1), lambda b, i: (0, 0)),
            pl.BlockSpec((D, 1), lambda b, i: (0, 0)),
            pl.BlockSpec((D, D), lambda b, i: (0, 0)),
        ],
        out_specs=pl.BlockSpec((1, D, TM), lambda b, i: (b, 0, i)),
        compiler_params=pltpu.CompilerParams(
            dimension_semantics=("parallel", "parallel")),
    )(pm,
      jnp.asarray(params["w1"].T, jnp.float32), col(params["b1"]),
      col(params["gamma"]), col(params["beta"]),
      jnp.asarray(params["w2"].T, jnp.float32), col(params["b2"]),
      col(pn), mt)

    # Metadata-only reshape to the (B, D, Hp, Wp) token grid (drop N padding).
    if Npad != N:
        tok = tok[:, :, :N]
    tok = tok.reshape(B, D, Hp, Wp)

    # ---- separable bilinear upsample (align_corners=False) + conv bias,
    #      tiled over (batch, channel group, output row band), NCHW output.
    rh = _interp_matrix(H, Hp)                                          # (H, Hp)
    rwt = _interp_matrix(W, Wp).T                                       # (Wp, W)
    DC = _pick_channel_block(D)
    HB = _pick_row_block(H)

    out = pl.pallas_call(
        _upsample_conv_kernel,
        out_shape=jax.ShapeDtypeStruct((B, D, H, W), jnp.float32),
        grid=(B, D // DC, H // HB),
        in_specs=[
            pl.BlockSpec((1, DC, Hp, Wp), lambda b, d, h: (b, d, 0, 0)),
            pl.BlockSpec((HB, Hp), lambda b, d, h: (h, 0)),
            pl.BlockSpec((Wp, W), lambda b, d, h: (0, 0)),
            pl.BlockSpec(memory_space=pltpu.MemorySpace.SMEM),          # conv bias (D,)
        ],
        out_specs=pl.BlockSpec((1, DC, HB, W), lambda b, d, h: (b, d, h, 0)),
        compiler_params=pltpu.CompilerParams(
            dimension_semantics=("parallel", "parallel", "parallel"),
            vmem_limit_bytes=32 * 1024 * 1024),
    )(tok, rh, rwt, jnp.asarray(params["conv_b"], jnp.float32))

    return out                                                          # (B, D, H, W)


def _reference(x, params, patch_size, output_dim):
    """Pure-JAX replica of the PyTorch forward (for correctness checking)."""
    B, C, H, W = x.shape
    P = patch_size
    Hp, Wp = H // P, W // P
    PP = P * P
    D = output_dim
    xp = jnp.transpose(x, (0, 2, 3, 1))
    xu = xp.reshape(B, Hp, P, Wp, P, C).transpose(0, 1, 3, 5, 2, 4)
    lp = xu.reshape(B, Hp * Wp, PP, C).mean(-1)                         # (B,N,PP)
    h1 = lp @ params["w1"] + params["b1"]
    mu = h1.mean(-1, keepdims=True)
    var = ((h1 - mu) ** 2).mean(-1, keepdims=True)
    h1 = (h1 - mu) / jnp.sqrt(var + 1e-5) * params["gamma"] + params["beta"]
    h2 = h1 @ params["w2"] + params["b2"]
    attn = jax.nn.softmax(h2, axis=-1)
    lo = h2 * attn
    lo_n = lo / jnp.maximum(jnp.linalg.norm(lo, axis=-1, keepdims=True), 1e-12)
    p_n = params["prompt"] / jnp.maximum(jnp.linalg.norm(params["prompt"]), 1e-12)
    mask = jnp.clip(lo_n @ p_n[:, None], 0.0, 1.0)
    lo = (lo * mask) @ params["tdt"]
    grid = lo.reshape(B, Hp, Wp, D)
    rh = _interp_matrix(H, Hp)
    rw = _interp_matrix(W, Wp)
    up = jnp.einsum("hp,wq,bpqd->bhwd", rh, rw, grid)
    out = up @ params["conv_w"].T + params["conv_b"]
    return out.transpose(0, 3, 1, 2)


if __name__ == "__main__":
    B, C, H, W = 2, 4, 16, 16
    patch_size = 2
    output_dim = 8
    PP = patch_size * patch_size
    D2 = output_dim // 2

    key = jax.random.PRNGKey(0)
    ks = jax.random.split(key, 11)
    params = {
        "w1": 0.1 * jax.random.normal(ks[0], (PP, D2), jnp.float32),      # mlp1.weight.T
        "b1": 0.1 * jax.random.normal(ks[1], (D2,), jnp.float32),
        "gamma": 1.0 + 0.1 * jax.random.normal(ks[2], (D2,), jnp.float32),  # LayerNorm affine
        "beta": 0.1 * jax.random.normal(ks[3], (D2,), jnp.float32),
        "w2": 0.1 * jax.random.normal(ks[4], (D2, output_dim), jnp.float32),  # mlp2.weight.T
        "b2": 0.1 * jax.random.normal(ks[5], (output_dim,), jnp.float32),
        "prompt": jax.random.normal(ks[6], (output_dim,), jnp.float32),
        "tdt": jnp.eye(output_dim, dtype=jnp.float32)
               + 0.05 * jax.random.normal(ks[7], (output_dim, output_dim), jnp.float32),
        "conv_w": 0.1 * jax.random.normal(ks[8], (output_dim, output_dim), jnp.float32),  # (out,in)
        "conv_b": 0.1 * jax.random.normal(ks[9], (output_dim,), jnp.float32),
    }
    x = jax.random.normal(ks[10], (B, C, H, W), jnp.float32)

    out = local_global_attention(x, params, patch_size, output_dim)
    out = jax.block_until_ready(out)

    ref = jax.block_until_ready(_reference(x, params, patch_size, output_dim))
    assert out.shape == (B, output_dim, H, W), out.shape
    err = float(jnp.max(jnp.abs(out - ref)))
    assert jnp.allclose(out, ref, rtol=1e-2, atol=1e-3), err
    print("KERNEL_OK")
</pallas_src>

<mosaic_0001>
module attributes {stable_mosaic.version = 11 : i64} {
  func.func @_token_kernel(%arg0: i32, %arg1: i32, %arg2: memref<1x4x128xf32, #tpu.memory_space<vmem>>, %arg3: memref<4x4xf32, #tpu.memory_space<vmem>>, %arg4: memref<4x1xf32, #tpu.memory_space<vmem>>, %arg5: memref<4x1xf32, #tpu.memory_space<vmem>>, %arg6: memref<4x1xf32, #tpu.memory_space<vmem>>, %arg7: memref<8x4xf32, #tpu.memory_space<vmem>>, %arg8: memref<8x1xf32, #tpu.memory_space<vmem>>, %arg9: memref<8x1xf32, #tpu.memory_space<vmem>>, %arg10: memref<8x8xf32, #tpu.memory_space<vmem>>, %arg11: memref<1x8x128xf32, #tpu.memory_space<vmem>>) attributes {dimension_semantics = [#tpu.dimension_semantics<parallel>, #tpu.dimension_semantics<parallel>], iteration_bounds = array<i64: 2, 1>, scalar_prefetch = 0 : i64, scratch_operands = 0 : i64, tpu.core_type = #tpu.core_type<tc>, window_params = [{transform_indices = @transform_0, window_bounds = array<i64: 1, 4, 128>}, {pipeline_mode = #tpu.pipeline_mode<synchronous>, transform_indices = @transform_1, window_bounds = array<i64: 4, 4>}, {pipeline_mode = #tpu.pipeline_mode<synchronous>, transform_indices = @transform_2, window_bounds = array<i64: 4, 1>}, {pipeline_mode = #tpu.pipeline_mode<synchronous>, transform_indices = @transform_3, window_bounds = array<i64: 4, 1>}, {pipeline_mode = #tpu.pipeline_mode<synchronous>, transform_indices = @transform_4, window_bounds = array<i64: 4, 1>}, {pipeline_mode = #tpu.pipeline_mode<synchronous>, transform_indices = @transform_5, window_bounds = array<i64: 8, 4>}, {pipeline_mode = #tpu.pipeline_mode<synchronous>, transform_indices = @transform_6, window_bounds = array<i64: 8, 1>}, {pipeline_mode = #tpu.pipeline_mode<synchronous>, transform_indices = @transform_7, window_bounds = array<i64: 8, 1>}, {pipeline_mode = #tpu.pipeline_mode<synchronous>, transform_indices = @transform_8, window_bounds = array<i64: 8, 8>}, {transform_indices = @transform_9, window_bounds = array<i64: 1, 8, 128>}]} {
    %c0 = arith.constant 0 : index
    %c0_0 = arith.constant 0 : index
    %c0_1 = arith.constant 0 : index
    %0 = vector.load %arg2[%c0, %c0_0, %c0_1] : memref<1x4x128xf32, #tpu.memory_space<vmem>>, vector<1x4x128xf32>
    %1 = vector.shape_cast %0 : vector<1x4x128xf32> to vector<4x128xf32>
    %c0_2 = arith.constant 0 : index
    %c0_3 = arith.constant 0 : index
    %2 = vector.load %arg3[%c0_2, %c0_3] : memref<4x4xf32, #tpu.memory_space<vmem>>, vector<4x4xf32>
    %cst = arith.constant dense<0.000000e+00> : vector<4x128xf32>
    %3 = tpu.matmul %2, %1, %cst {dimension_numbers = #tpu.dot_dimension_numbers<[1], [0], [0], [1], [0, 0, 1, 1], [], []>} : vector<4x4xf32>, vector<4x128xf32>, vector<4x128xf32> -> vector<4x128xf32>
    %c0_4 = arith.constant 0 : index
    %c0_5 = arith.constant 0 : index
    %4 = vector.load %arg4[%c0_4, %c0_5] : memref<4x1xf32, #tpu.memory_space<vmem>>, vector<4x1xf32>
    %5 = vector.broadcast %4 : vector<4x1xf32> to vector<4x128xf32>
    %6 = arith.addf %3, %5 : vector<4x128xf32>
    %cst_6 = arith.constant dense<0.000000e+00> : vector<128xf32>
    %7 = vector.multi_reduction <add>, %6, %cst_6 [0] : vector<4x128xf32> to vector<128xf32>
    %8 = vector.shape_cast %7 : vector<128xf32> to vector<1x128xf32>
    %cst_7 = arith.constant 4.000000e+00 : f32
    %9 = vector.broadcast %cst_7 : f32 to vector<1x128xf32>
    %10 = arith.divf %8, %9 : vector<1x128xf32>
    %11 = vector.broadcast %10 : vector<1x128xf32> to vector<4x128xf32>
    %12 = arith.subf %6, %11 : vector<4x128xf32>
    %13 = arith.mulf %12, %12 : vector<4x128xf32>
    %cst_8 = arith.constant dense<0.000000e+00> : vector<128xf32>
    %14 = vector.multi_reduction <add>, %13, %cst_8 [0] : vector<4x128xf32> to vector<128xf32>
    %15 = vector.shape_cast %14 : vector<128xf32> to vector<1x128xf32>
    %cst_9 = arith.constant 4.000000e+00 : f32
    %16 = vector.broadcast %cst_9 : f32 to vector<1x128xf32>
    %17 = arith.divf %15, %16 : vector<1x128xf32>
    %18 = vector.broadcast %10 : vector<1x128xf32> to vector<4x128xf32>
    %19 = arith.subf %6, %18 : vector<4x128xf32>
    %cst_10 = arith.constant 9.99999974E-6 : f32
    %20 = vector.broadcast %cst_10 : f32 to vector<1x128xf32>
    %21 = arith.addf %17, %20 : vector<1x128xf32>
    %22 = math.rsqrt %21 : vector<1x128xf32>
    %23 = vector.broadcast %22 : vector<1x128xf32> to vector<4x128xf32>
    %24 = arith.mulf %19, %23 : vector<4x128xf32>
    %c0_11 = arith.constant 0 : index
    %c0_12 = arith.constant 0 : index
    %25 = vector.load %arg5[%c0_11, %c0_12] : memref<4x1xf32, #tpu.memory_space<vmem>>, vector<4x1xf32>
    %26 = vector.broadcast %25 : vector<4x1xf32> to vector<4x128xf32>
    %27 = arith.mulf %24, %26 : vector<4x128xf32>
    %c0_13 = arith.constant 0 : index
    %c0_14 = arith.constant 0 : index
    %28 = vector.load %arg6[%c0_13, %c0_14] : memref<4x1xf32, #tpu.memory_space<vmem>>, vector<4x1xf32>
    %29 = vector.broadcast %28 : vector<4x1xf32> to vector<4x128xf32>
    %30 = arith.addf %27, %29 : vector<4x128xf32>
    %c0_15 = arith.constant 0 : index
    %c0_16 = arith.constant 0 : index
    %31 = vector.load %arg7[%c0_15, %c0_16] : memref<8x4xf32, #tpu.memory_space<vmem>>, vector<8x4xf32>
    %cst_17 = arith.constant dense<0.000000e+00> : vector<8x128xf32>
    %32 = tpu.matmul %31, %30, %cst_17 {dimension_numbers = #tpu.dot_dimension_numbers<[1], [0], [0], [1], [0, 0, 1, 1], [], []>} : vector<8x4xf32>, vector<4x128xf32>, vector<8x128xf32> -> vector<8x128xf32>
    %c0_18 = arith.constant 0 : index
    %c0_19 = arith.constant 0 : index
    %33 = vector.load %arg8[%c0_18, %c0_19] : memref<8x1xf32, #tpu.memory_space<vmem>>, vector<8x1xf32>
    %34 = vector.broadcast %33 : vector<8x1xf32> to vector<8x128xf32>
    %35 = arith.addf %32, %34 : vector<8x128xf32>
    %cst_20 = arith.constant dense<0xFF800000> : vector<128xf32>
    %36 = vector.multi_reduction <maximumf>, %35, %cst_20 [0] : vector<8x128xf32> to vector<128xf32>
    %37 = vector.shape_cast %36 : vector<128xf32> to vector<1x128xf32>
    %38 = vector.broadcast %37 : vector<1x128xf32> to vector<8x128xf32>
    %39 = arith.subf %35, %38 : vector<8x128xf32>
    %40 = math.exp %39 : vector<8x128xf32>
    %cst_21 = arith.constant dense<0.000000e+00> : vector<128xf32>
    %41 = vector.multi_reduction <add>, %40, %cst_21 [0] : vector<8x128xf32> to vector<128xf32>
    %42 = vector.shape_cast %41 : vector<128xf32> to vector<1x128xf32>
    %43 = tpu.reciprocal %42 {approx = true} : vector<1x128xf32> -> vector<1x128xf32>
    %44 = vector.broadcast %43 : vector<1x128xf32> to vector<8x128xf32>
    %45 = arith.mulf %40, %44 : vector<8x128xf32>
    %46 = arith.mulf %35, %45 : vector<8x128xf32>
    %47 = arith.mulf %46, %46 : vector<8x128xf32>
    %cst_22 = arith.constant dense<0.000000e+00> : vector<128xf32>
    %48 = vector.multi_reduction <add>, %47, %cst_22 [0] : vector<8x128xf32> to vector<128xf32>
    %49 = vector.shape_cast %48 : vector<128xf32> to vector<1x128xf32>
    %cst_23 = arith.constant 1.000000e-24 : f32
    %50 = vector.broadcast %cst_23 : f32 to vector<1x128xf32>
    %51 = arith.maximumf %49, %50 : vector<1x128xf32>
    %52 = math.rsqrt %51 : vector<1x128xf32>
    %c0_24 = arith.constant 0 : index
    %c0_25 = arith.constant 0 : index
    %53 = vector.load %arg9[%c0_24, %c0_25] : memref<8x1xf32, #tpu.memory_space<vmem>>, vector<8x1xf32>
    %54 = vector.broadcast %53 : vector<8x1xf32> to vector<8x128xf32>
    %55 = arith.mulf %46, %54 : vector<8x128xf32>
    %cst_26 = arith.constant dense<0.000000e+00> : vector<128xf32>
    %56 = vector.multi_reduction <add>, %55, %cst_26 [0] : vector<8x128xf32> to vector<128xf32>
    %57 = vector.shape_cast %56 : vector<128xf32> to vector<1x128xf32>
    %58 = arith.mulf %57, %52 : vector<1x128xf32>
    %cst_27 = arith.constant 0.000000e+00 : f32
    %cst_28 = arith.constant 1.000000e+00 : f32
    %59 = vector.broadcast %cst_27 : f32 to vector<1x128xf32>
    %60 = arith.maximumf %59, %58 : vector<1x128xf32>
    %61 = vector.broadcast %cst_28 : f32 to vector<1x128xf32>
    %62 = arith.minimumf %61, %60 : vector<1x128xf32>
    %63 = vector.broadcast %62 : vector<1x128xf32> to vector<8x128xf32>
    %64 = arith.mulf %46, %63 : vector<8x128xf32>
    %c0_29 = arith.constant 0 : index
    %c0_30 = arith.constant 0 : index
    %65 = vector.load %arg10[%c0_29, %c0_30] : memref<8x8xf32, #tpu.memory_space<vmem>>, vector<8x8xf32>
    %cst_31 = arith.constant dense<0.000000e+00> : vector<8x128xf32>
    %66 = tpu.matmul %65, %64, %cst_31 {dimension_numbers = #tpu.dot_dimension_numbers<[1], [0], [0], [1], [0, 0, 1, 1], [], []>} : vector<8x8xf32>, vector<8x128xf32>, vector<8x128xf32> -> vector<8x128xf32>
    %c0_32 = arith.constant 0 : index
    %c0_33 = arith.constant 0 : index
    %c0_34 = arith.constant 0 : index
    %67 = vector.load %arg11[%c0_32, %c0_33, %c0_34] : memref<1x8x128xf32, #tpu.memory_space<vmem>>, vector<1x8x128xf32>
    %68 = vector.shape_cast %67 : vector<1x8x128xf32> to vector<8x128xf32>
    %69 = vector.shape_cast %66 : vector<8x128xf32> to vector<1x8x128xf32>
    tpu.vector_store %arg11[%c0_32, %c0_33, %c0_34], %69 {strides = array<i32>} : memref<1x8x128xf32, #tpu.memory_space<vmem>>, vector<1x8x128xf32>,
    return
  }
  func.func @transform_0(%arg0: i32, %arg1: i32) -> (i32, i32, i32) {
    %c0_i32 = arith.constant 0 : i32
    %c0_i32_0 = arith.constant 0 : i32
    return %arg0, %c0_i32, %arg1 : i32, i32, i32
  }
  func.func @transform_1(%arg0: i32, %arg1: i32) -> (i32, i32) {
    %c0_i32 = arith.constant 0 : i32
    %c0_i32_0 = arith.constant 0 : i32
    %c0_i32_1 = arith.constant 0 : i32
    return %c0_i32, %c0_i32_0 : i32, i32
  }
  func.func @transform_2(%arg0: i32, %arg1: i32) -> (i32, i32) {
    %c0_i32 = arith.constant 0 : i32
    %c0_i32_0 = arith.constant 0 : i32
    %c0_i32_1 = arith.constant 0 : i32
    return %c0_i32, %c0_i32_0 : i32, i32
  }
  func.func @transform_3(%arg0: i32, %arg1: i32) -> (i32, i32) {
    %c0_i32 = arith.constant 0 : i32
    %c0_i32_0 = arith.constant 0 : i32
    %c0_i32_1 = arith.constant 0 : i32
    return %c0_i32, %c0_i32_0 : i32, i32
  }
  func.func @transform_4(%arg0: i32, %arg1: i32) -> (i32, i32) {
    %c0_i32 = arith.constant 0 : i32
    %c0_i32_0 = arith.constant 0 : i32
    %c0_i32_1 = arith.constant 0 : i32
    return %c0_i32, %c0_i32_0 : i32, i32
  }
  func.func @transform_5(%arg0: i32, %arg1: i32) -> (i32, i32) {
    %c0_i32 = arith.constant 0 : i32
    %c0_i32_0 = arith.constant 0 : i32
    %c0_i32_1 = arith.constant 0 : i32
    return %c0_i32, %c0_i32_0 : i32, i32
  }
  func.func @transform_6(%arg0: i32, %arg1: i32) -> (i32, i32) {
    %c0_i32 = arith.constant 0 : i32
    %c0_i32_0 = arith.constant 0 : i32
    %c0_i32_1 = arith.constant 0 : i32
    return %c0_i32, %c0_i32_0 : i32, i32
  }
  func.func @transform_7(%arg0: i32, %arg1: i32) -> (i32, i32) {
    %c0_i32 = arith.constant 0 : i32
    %c0_i32_0 = arith.constant 0 : i32
    %c0_i32_1 = arith.constant 0 : i32
    return %c0_i32, %c0_i32_0 : i32, i32
  }
  func.func @transform_8(%arg0: i32, %arg1: i32) -> (i32, i32) {
    %c0_i32 = arith.constant 0 : i32
    %c0_i32_0 = arith.constant 0 : i32
    %c0_i32_1 = arith.constant 0 : i32
    return %c0_i32, %c0_i32_0 : i32, i32
  }
  func.func @transform_9(%arg0: i32, %arg1: i32) -> (i32, i32, i32) {
    %c0_i32 = arith.constant 0 : i32
    %c0_i32_0 = arith.constant 0 : i32
    return %arg0, %c0_i32, %arg1 : i32, i32, i32
  }
}

</mosaic_0001>

<llo_original>
// kernel: tpu_custom_call.1
$region0: #{tpu_custom_call.1}
  #allocation0 [shape = 'u32[]', space=smem, size = 0x4, offset = 0x4, fixed_abs, tag = 'smem constant byte address 0x4 - core index']
  #allocation1 [shape = 'u32[144,128]{1,0:T(1,128)}', space=vmem, size = 0x12000, scoped, tag = 'internal scratch']
  %s0 = inlined_call_operand.vmem [shape: f32[2,4,128], index: 0, kind: input, shape index: {}]
  %s1 = inlined_call_operand.vmem [shape: f32[4,4], index: 1, kind: input, shape index: {}]
  %s2 = inlined_call_operand.vmem [shape: f32[4,1], index: 2, kind: input, shape index: {}]
  %s3 = inlined_call_operand.vmem [shape: f32[4,1], index: 3, kind: input, shape index: {}]
  %s4 = inlined_call_operand.vmem [shape: f32[4,1], index: 4, kind: input, shape index: {}]
  %s5 = inlined_call_operand.vmem [shape: f32[8,4], index: 5, kind: input, shape index: {}]
  %s6 = inlined_call_operand.vmem [shape: f32[8,1], index: 6, kind: input, shape index: {}]
  %s7 = inlined_call_operand.vmem [shape: f32[8,1], index: 7, kind: input, shape index: {}]
  %s8 = inlined_call_operand.vmem [shape: f32[8,8], index: 8, kind: input, shape index: {}]
  %s9 = inlined_call_operand.hbm [shape: f32[2,8,128], index: 9, kind: output, shape index: {}]
  %s10 = sld [smem:[#allocation0]]
  $region69: #{tpu_custom_call.1} parent=0
    _
  %s12 = ssub.s32 1, %s10
  %s13 = scalar_select 0, %s12, %s10
  $region1: #{tpu_custom_call.1} parent=0
    #allocation2 [shape = 'u8[8192]{0}', space=vmem, size = 0x2000, scoped, tag = 'output window, operand 0']
    #allocation3 [shape = 's32[2]{0}', space=sflag, size = 0x8, scoped, tag = 'scoped memory for tpu_custom_call.1']
    %14 = vsyncpa [#allocation3], 0
    %s15 = scalar_lea.sflag [#allocation3], 1
    %16 = vsyncpa %s15, 0
    loop: start=0, step=1, limit=4
    $region2: #{tpu_custom_call.1} parent=1 // loop_pre_header
      _
    $region3: #{tpu_custom_call.1} parent=1 // loop_header
      %s18 = sphi 0, %s22
      %p19 = scmp.ge.s32.totalorder %s18, 4
      %s25 = sphi 0, %s37
      %s26 = sphi 0, %s33
      %s27 = sphi 0, %s25
      %s28 = sphi 0, %s26
      %s29 = sphi 0, %s27
      %s30 = sphi 0, %s28
      %s42 = sphi 0, %s44
      %s45 = sphi 0, %s42
      %s46 = sphi 0, %s45
      %s62 = sphi 0, %s46
      %s66 = sphi 0, %s66
      %s68 = sphi 0, %s66
      %s69 = sphi 0, %s68
      %s83 = sphi 0, %s69
      %s87 = sphi 0, %s87
      %s89 = sphi 0, %s87
      %s90 = sphi 0, %s89
      %s104 = sphi 0, %s90
      %s108 = sphi 0, %s108
      %s110 = sphi 0, %s108
      %s111 = sphi 0, %s110
      %s125 = sphi 0, %s111
      %s129 = sphi 0, %s129
      %s131 = sphi 0, %s129
      %s132 = sphi 0, %s131
      %s146 = sphi 0, %s132
      %s150 = sphi 0, %s150
      %s152 = sphi 0, %s150
      %s153 = sphi 0, %s152
      %s167 = sphi 0, %s153
      %s171 = sphi 0, %s171
      %s173 = sphi 0, %s171
      %s174 = sphi 0, %s173
      %s188 = sphi 0, %s174
      %s192 = sphi 0, %s192
      %s194 = sphi 0, %s192
      %s195 = sphi 0, %s194
      %s209 = sphi 0, %s195
      %s213 = sphi 0, %s213
      %s215 = sphi 0, %s213
      %s216 = sphi 0, %s215
      %s230 = sphi 0, %s216
      %s238 = sphi 0, %s240
      %s241 = sphi 0, %s238
      %s242 = sphi 0, %s241
      %s258 = sphi 0, %s242
    $region4: #{tpu_custom_call.1} parent=1 // loop_header_branch
      %21 = sbr.rel (%p19) target = $region8
    $region5: #{tpu_custom_call.1} parent=1 // loop_body
      %s23 = ssub.s32 %s18, 1
      %s24 = ssub.s32 %s18, 2
      %s31 = sadd.s32 1, %s26
      %p32 = scmp.ge.s32.totalorder %s31, 1
      %s33 = scalar_select %p32, 0, %s31
      %s34 = sadd.s32 1, %s25
      %s35 = scalar_select %p32, %s34, %s25
      %p36 = scmp.ge.s32.totalorder %s35, 2
      %s37 = scalar_select %p36, 0, %s35
      %s38 = ssub.s32 %s25, %s37
      %s39 = ssub.s32 %s26, %s33
      %s40 = sor.u32 %s38, %s39
      %p41 = scmp.eq.s32.totalorder %s40, 0
      %s43 = sadd.s32 %s42, 1
      %s44 = scalar_select %p41, %s42, %s43
      %p47 = pneg %p41
      %p48 = scmp.eq.s32.totalorder %s18, 1
      %p49 = por %p47, %p48
      %p50 = scmp.ne.s32.totalorder %s42, %s45
      %p51 = scmp.eq.s32.totalorder %s18, 0
      %p52 = por %p50, %p51
      %p53 = scmp.ne.s32.totalorder %s42, %s45
      %p54 = scmp.eq.s32.totalorder %s23, 1
      %p55 = por %p53, %p54
      %p56 = scmp.ne.s32.totalorder %s45, %s46
      %p57 = scmp.eq.s32.totalorder %s23, 0
      %p58 = por %p56, %p57
      %p59 = scmp.ne.s32.totalorder %s45, %s46
      %p60 = scmp.eq.s32.totalorder %s24, 1
      %p61 = por %p59, %p60
      %p63 = scmp.ne.s32.totalorder %s46, %s62
      %p64 = scmp.eq.s32.totalorder %s24, 0
      %p65 = por %p63, %p64
      %s67 = sadd.s32 %s66, 1
      %p70 = scmp.eq.s32.totalorder %s18, 1
      %p71 = scmp.ne.s32.totalorder %s66, %s68
      %p72 = scmp.eq.s32.totalorder %s18, 0
      %p73 = por %p71, %p72
      %p74 = scmp.ne.s32.totalorder %s66, %s68
      %p75 = scmp.eq.s32.totalorder %s23, 1
      %p76 = por %p74, %p75
      %p77 = scmp.ne.s32.totalorder %s68, %s69
      %p78 = scmp.eq.s32.totalorder %s23, 0
      %p79 = por %p77, %p78
      %p80 = scmp.ne.s32.totalorder %s68, %s69
      %p81 = scmp.eq.s32.totalorder %s24, 1
      %p82 = por %p80, %p81
      %p84 = scmp.ne.s32.totalorder %s69, %s83
      %p85 = scmp.eq.s32.totalorder %s24, 0
      %p86 = por %p84, %p85
      %s88 = sadd.s32 %s87, 1
      %p91 = scmp.eq.s32.totalorder %s18, 1
      %p92 = scmp.ne.s32.totalorder %s87, %s89
      %p93 = scmp.eq.s32.totalorder %s18, 0
      %p94 = por %p92, %p93
      %p95 = scmp.ne.s32.totalorder %s87, %s89
      %p96 = scmp.eq.s32.totalorder %s23, 1
      %p97 = por %p95, %p96
      %p98 = scmp.ne.s32.totalorder %s89, %s90
      %p99 = scmp.eq.s32.totalorder %s23, 0
      %p100 = por %p98, %p99
      %p101 = scmp.ne.s32.totalorder %s89, %s90
      %p102 = scmp.eq.s32.totalorder %s24, 1
      %p103 = por %p101, %p102
      %p105 = scmp.ne.s32.totalorder %s90, %s104
      %p106 = scmp.eq.s32.totalorder %s24, 0
      %p107 = por %p105, %p106
      %s109 = sadd.s32 %s108, 1
      %p112 = scmp.eq.s32.totalorder %s18, 1
      %p113 = scmp.ne.s32.totalorder %s108, %s110
      %p114 = scmp.eq.s32.totalorder %s18, 0
      %p115 = por %p113, %p114
      %p116 = scmp.ne.s32.totalorder %s108, %s110
      %p117 = scmp.eq.s32.totalorder %s23, 1
      %p118 = por %p116, %p117
      %p119 = scmp.ne.s32.totalorder %s110, %s111
      %p120 = scmp.eq.s32.totalorder %s23, 0
      %p121 = por %p119, %p120
      %p122 = scmp.ne.s32.totalorder %s110, %s111
      %p123 = scmp.eq.s32.totalorder %s24, 1
      %p124 = por %p122, %p123
      %p126 = scmp.ne.s32.totalorder %s111, %s125
      %p127 = scmp.eq.s32.totalorder %s24, 0
      %p128 = por %p126, %p127
      %s130 = sadd.s32 %s129, 1
      %p133 = scmp.eq.s32.totalorder %s18, 1
      %p134 = scmp.ne.s32.totalorder %s129, %s131
      %p135 = scmp.eq.s32.totalorder %s18, 0
      %p136 = por %p134, %p135
      %p137 = scmp.ne.s32.totalorder %s129, %s131
      %p138 = scmp.eq.s32.totalorder %s23, 1
      %p139 = por %p137, %p138
      %p140 = scmp.ne.s32.totalorder %s131, %s132
      %p141 = scmp.eq.s32.totalorder %s23, 0
      %p142 = por %p140, %p141
      %p143 = scmp.ne.s32.totalorder %s131, %s132
      %p144 = scmp.eq.s32.totalorder %s24, 1
      %p145 = por %p143, %p144
      %p147 = scmp.ne.s32.totalorder %s132, %s146
      %p148 = scmp.eq.s32.totalorder %s24, 0
      %p149 = por %p147, %p148
      %s151 = sadd.s32 %s150, 1
      %p154 = scmp.eq.s32.totalorder %s18, 1
      %p155 = scmp.ne.s32.totalorder %s150, %s152
      %p156 = scmp.eq.s32.totalorder %s18, 0
      %p157 = por %p155, %p156
      %p158 = scmp.ne.s32.totalorder %s150, %s152
      %p159 = scmp.eq.s32.totalorder %s23, 1
      %p160 = por %p158, %p159
      %p161 = scmp.ne.s32.totalorder %s152, %s153
      %p162 = scmp.eq.s32.totalorder %s23, 0
      %p163 = por %p161, %p162
      %p164 = scmp.ne.s32.totalorder %s152, %s153
      %p165 = scmp.eq.s32.totalorder %s24, 1
      %p166 = por %p164, %p165
      %p168 = scmp.ne.s32.totalorder %s153, %s167
      %p169 = scmp.eq.s32.totalorder %s24, 0
      %p170 = por %p168, %p169
      %s172 = sadd.s32 %s171, 1
      %p175 = scmp.eq.s32.totalorder %s18, 1
      %p176 = scmp.ne.s32.totalorder %s171, %s173
      %p177 = scmp.eq.s32.totalorder %s18, 0
      %p178 = por %p176, %p177
      %p179 = scmp.ne.s32.totalorder %s171, %s173
      %p180 = scmp.eq.s32.totalorder %s23, 1
      %p181 = por %p179, %p180
      %p182 = scmp.ne.s32.totalorder %s173, %s174
      %p183 = scmp.eq.s32.totalorder %s23, 0
      %p184 = por %p182, %p183
      %p185 = scmp.ne.s32.totalorder %s173, %s174
      %p186 = scmp.eq.s32.totalorder %s24, 1
      %p187 = por %p185, %p186
      %p189 = scmp.ne.s32.totalorder %s174, %s188
      %p190 = scmp.eq.s32.totalorder %s24, 0
      %p191 = por %p189, %p190
      %s193 = sadd.s32 %s192, 1
      %p196 = scmp.eq.s32.totalorder %s18, 1
      %p197 = scmp.ne.s32.totalorder %s192, %s194
      %p198 = scmp.eq.s32.totalorder %s18, 0
      %p199 = por %p197, %p198
      %p200 = scmp.ne.s32.totalorder %s192, %s194
      %p201 = scmp.eq.s32.totalorder %s23, 1
      %p202 = por %p200, %p201
      %p203 = scmp.ne.s32.totalorder %s194, %s195
      %p204 = scmp.eq.s32.totalorder %s23, 0
      %p205 = por %p203, %p204
      %p206 = scmp.ne.s32.totalorder %s194, %s195
      %p207 = scmp.eq.s32.totalorder %s24, 1
      %p208 = por %p206, %p207
      %p210 = scmp.ne.s32.totalorder %s195, %s209
      %p211 = scmp.eq.s32.totalorder %s24, 0
      %p212 = por %p210, %p211
      %s214 = sadd.s32 %s213, 1
      %p217 = scmp.eq.s32.totalorder %s18, 1
      %p218 = scmp.ne.s32.totalorder %s213, %s215
      %p219 = scmp.eq.s32.totalorder %s18, 0
      %p220 = por %p218, %p219
      %p221 = scmp.ne.s32.totalorder %s213, %s215
      %p222 = scmp.eq.s32.totalorder %s23, 1
      %p223 = por %p221, %p222
      %p224 = scmp.ne.s32.totalorder %s215, %s216
      %p225 = scmp.eq.s32.totalorder %s23, 0
      %p226 = por %p224, %p225
      %p227 = scmp.ne.s32.totalorder %s215, %s216
      %p228 = scmp.eq.s32.totalorder %s24, 1
      %p229 = por %p227, %p228
      %p231 = scmp.ne.s32.totalorder %s216, %s230
      %p232 = scmp.eq.s32.totalorder %s24, 0
      %p233 = por %p231, %p232
      %s234 = ssub.s32 %s25, %s37
      %s235 = ssub.s32 %s26, %s33
      %s236 = sor.u32 %s234, %s235
      %p237 = scmp.eq.s32.totalorder %s236, 0
      %s239 = sadd.s32 %s238, 1
      %s240 = scalar_select %p237, %s238, %s239
      %p243 = pneg %p237
      %p244 = scmp.eq.s32.totalorder %s18, 1
      %p245 = por %p243, %p244
      %p246 = scmp.ne.s32.totalorder %s238, %s241
      %p247 = scmp.eq.s32.totalorder %s18, 0
      %p248 = por %p246, %p247
      %p249 = scmp.ne.s32.totalorder %s238, %s241
      %p250 = scmp.eq.s32.totalorder %s23, 1
      %p251 = por %p249, %p250
      %p252 = scmp.ne.s32.totalorder %s241, %s242
      %p253 = scmp.eq.s32.totalorder %s23, 0
      %p254 = por %p252, %p253
      %p255 = scmp.ne.s32.totalorder %s241, %s242
      %p256 = scmp.eq.s32.totalorder %s24, 1
      %p257 = por %p255, %p256
      %p259 = scmp.ne.s32.totalorder %s242, %s258
      %p260 = scmp.eq.s32.totalorder %s24, 0
      %p261 = por %p259, %p260
      %p262 = scmp.le.s32.totalorder 1, %s18
      %p263 = scmp.lt.s32.totalorder %s18, 3
      %p264 = pnand %p262, %p263
      %p265 = pneg %p264
      // Predicated region
      $region9: #{tpu_custom_call.1} parent=5 // pred_check
        _
      $region10: #{tpu_custom_call.1} parent=5 // pred_check_branch
        %267 = sbr.rel (%p264) target = $region12
      $region11: #{tpu_custom_call.1} parent=5 // pred_region
        %s268 = ssub.s32 %s18, 1
        // Predicated region
        $region13: #{tpu_custom_call.1} parent=11 // pred_check
          %p269 = pneg %p79
        $region14: #{tpu_custom_call.1} parent=11 // pred_check_branch
          %271 = sbr.rel (%p269) target = $region16
        $region15: #{tpu_custom_call.1} parent=11 // pred_region
          _
        $region16: #{tpu_custom_call.1} parent=11 // pred_fallthru
          _
        // Predicated region
        $region17: #{tpu_custom_call.1} parent=11 // pred_check
          %p272 = pneg %p100
        $region18: #{tpu_custom_call.1} parent=11 // pred_check_branch
          %274 = sbr.rel (%p272) target = $region20
        $region19: #{tpu_custom_call.1} parent=11 // pred_region
          _
        $region20: #{tpu_custom_call.1} parent=11 // pred_fallthru
          _
        // Predicated region
        $region21: #{tpu_custom_call.1} parent=11 // pred_check
          %p275 = pneg %p121
        $region22: #{tpu_custom_call.1} parent=11 // pred_check_branch
          %277 = sbr.rel (%p275) target = $region24
        $region23: #{tpu_custom_call.1} parent=11 // pred_region
          _
        $region24: #{tpu_custom_call.1} parent=11 // pred_fallthru
          _
        // Predicated region
        $region25: #{tpu_custom_call.1} parent=11 // pred_check
          %p278 = pneg %p142
        $region26: #{tpu_custom_call.1} parent=11 // pred_check_branch
          %280 = sbr.rel (%p278) target = $region28
        $region27: #{tpu_custom_call.1} parent=11 // pred_region
          _
        $region28: #{tpu_custom_call.1} parent=11 // pred_fallthru
          _
        // Predicated region
        $region29: #{tpu_custom_call.1} parent=11 // pred_check
          %p281 = pneg %p163
        $region30: #{tpu_custom_call.1} parent=11 // pred_check_branch
          %283 = sbr.rel (%p281) target = $region32
        $region31: #{tpu_custom_call.1} parent=11 // pred_region
          _
        $region32: #{tpu_custom_call.1} parent=11 // pred_fallthru
          _
        // Predicated region
        $region33: #{tpu_custom_call.1} parent=11 // pred_check
          %p284 = pneg %p184
        $region34: #{tpu_custom_call.1} parent=11 // pred_check_branch
          %286 = sbr.rel (%p284) target = $region36
        $region35: #{tpu_custom_call.1} parent=11 // pred_region
          _
        $region36: #{tpu_custom_call.1} parent=11 // pred_fallthru
          _
        // Predicated region
        $region37: #{tpu_custom_call.1} parent=11 // pred_check
          %p287 = pneg %p205
        $region38: #{tpu_custom_call.1} parent=11 // pred_check_branch
          %289 = sbr.rel (%p287) target = $region40
        $region39: #{tpu_custom_call.1} parent=11 // pred_region
          _
        $region40: #{tpu_custom_call.1} parent=11 // pred_fallthru
          _
        // Predicated region
        $region41: #{tpu_custom_call.1} parent=11 // pred_check
          %p290 = pneg %p226
        $region42: #{tpu_custom_call.1} parent=11 // pred_check_branch
          %292 = sbr.rel (%p290) target = $region44
        $region43: #{tpu_custom_call.1} parent=11 // pred_region
          _
        $region44: #{tpu_custom_call.1} parent=11 // pred_fallthru
          _
      $region12: #{tpu_custom_call.1} parent=5 // pred_fallthru
        _
      %p293 = scmp.lt.s32.totalorder %s18, 2
      // Predicated region
      $region45: #{tpu_custom_call.1} parent=5 // pred_check
        %p294 = pneg %p293
      $region46: #{tpu_custom_call.1} parent=5 // pred_check_branch
        %296 = sbr.rel (%p294) target = $region48
      $region47: #{tpu_custom_call.1} parent=5 // pred_region
        // Predicated region
        $region49: #{tpu_custom_call.1} parent=47 // pred_check
          %p297 = pneg %p52
        $region50: #{tpu_custom_call.1} parent=47 // pred_check_branch
          %299 = sbr.rel (%p297) target = $region52
        $region51: #{tpu_custom_call.1} parent=47 // pred_region
          %p300 = scmp.lt.s32.totalorder %s25, 1
          %s301 = scalar_select %p300, %s25, 1
          %p302 = scmp.lt.s32.totalorder %s26, 0
          %s303 = scalar_select %p302, %s26, 0
          %s304 = sadd.s32 %s303, %s301
          %s305 = smul.addr %s304, 4
          %s306 = scalar_lea.vmem %s0, %s305
        $region52: #{tpu_custom_call.1} parent=47 // pred_fallthru
          _
      $region48: #{tpu_custom_call.1} parent=5 // pred_fallthru
        _
      %p307 = scmp.le.s32.totalorder 1, %s18
      %p308 = scmp.lt.s32.totalorder %s18, 3
      %p309 = pnand %p307, %p308
      %p310 = pneg %p309
      // Predicated region
      $region53: #{tpu_custom_call.1} parent=5 // pred_check
        _
      $region54: #{tpu_custom_call.1} parent=5 // pred_check_branch
        %312 = sbr.rel (%p309) target = $region56
      $region55: #{tpu_custom_call.1} parent=5 // pred_region
        %s313 = ssub.s32 %s18, 1
        %p314 = scmp.lt.s32.totalorder %s27, 1
        %s315 = scalar_select %p314, %s27, 1
        %p316 = scmp.lt.s32.totalorder %s28, 0
        %s317 = scalar_select %p316, %s28, 0
        %s318 = sadd.s32 %s317, %s315
        %s319 = smul.addr %s318, 4
        %s320 = scalar_lea.vmem %s0, %s319
        %p321 = pneg %p58
        %p322 = pneg %p55
        %p323 = pneg %p79
        %p324 = pneg %p76
        %p325 = pneg %p100
        %p326 = pneg %p97
        %p327 = pneg %p121
        %p328 = pneg %p118
        %p329 = pneg %p142
        %p330 = pneg %p139
        %p331 = pneg %p163
        %p332 = pneg %p160
        %p333 = pneg %p184
        %p334 = pneg %p181
        %p335 = pneg %p205
        %p336 = pneg %p202
        %p337 = pneg %p226
        %p338 = pneg %p223
        %p339 = pneg %p254
        %p340 = pneg %p251
        %s341 = sand.u32 %s241, 1
        %s342 = scalar_lea.sflag [#allocation3], %s341
        %s343 = sand.u32 %s241, 1
        %s344 = smul.addr %s343, 8
        %s345 = scalar_lea.vmem [#allocation2], %s344
        %p346 = scmp.lt.s32.totalorder %s27, 1
        %s347 = scalar_select %p346, %s27, 1
        %p348 = scmp.lt.s32.totalorder %s28, 0
        %s349 = scalar_select %p348, %s28, 0
        %s350 = sadd.s32 %s349, %s347
        %s351 = smul.addr %s350, 4
        %s352 = scalar_lea.vmem %s0, %s351
        %v353 = vld [vmem:[%s352] sm:$0xf]
        %v354 = vld [vmem:[%s1] sm:$0xf]
        %v355 = vld [vmem:[%s2] sm:$0xf]
        %357 = vset.pattern.permute.xlu0 0
        %358 = vperm.xlu0 %357, %v355
        %v359 = vpop.permute.xlu0 %358
        %vm361 = vcmask 31744
        %v363 = vsel %vm361, %v354, 0
        %vm365 = vcmask 1043456
        %v367 = vsel %vm365, %v353, 0
        %369 = vmatprep.subr.mxu0 0.0
        %370 = vmatpush1.msra.mxu0 %v367
        %371 = vmatprep.subr.mxu0 0.0
        %372 = vmatpush1.msra.mxu0 0.0
        %373 = vmatprep.subr.mxu0 0.0
        %374 = vmatpush1.msra.mxu0 0.0
        %375 = vmatprep.subr.mxu0 0.0
        %376 = vmatpush1.msra.mxu0 0.0
        %377 = vmatprep.subr.mxu0 0.0
        %378 = vmatpush1.msra.mxu0 0.0
        %379 = vmatprep.subr.mxu0 0.0
        %380 = vmatpush1.msra.mxu0 0.0
        %381 = vmatprep.subr.mxu0 0.0
        %382 = vmatpush1.msra.mxu0 0.0
        %383 = vmatprep.subr.mxu0 0.0
        %384 = vmatpush1.msra.mxu0 0.0
        %385 = vmatprep.subr.mxu0 0.0
        %386 = vmatpush1.msra.mxu0 0.0
        %387 = vmatprep.subr.mxu0 0.0
        %388 = vmatpush1.msra.mxu0 0.0
        %389 = vmatprep.subr.mxu0 0.0
        %390 = vmatpush1.msra.mxu0 0.0
        %391 = vmatprep.subr.mxu0 0.0
        %392 = vmatpush1.msra.mxu0 0.0
        %393 = vmatprep.subr.mxu0 0.0
        %394 = vmatpush1.msra.mxu0 0.0
        %395 = vmatprep.subr.mxu0 0.0
        %396 = vmatpush1.msra.mxu0 0.0
        %397 = vmatprep.subr.mxu0 0.0
        %398 = vmatpush1.msra.mxu0 0.0
        %399 = vmatprep.subr.mxu0 0.0
        %400 = vmatpush1.msra.mxu0 0.0
        %401 = vmatprep.subr.mxu0 0.0
        %402 = vmatpush1.msra.mxu0 0.0
        %403 = vmatprep.subr.mxu0 0.0
        %404 = vmatpush1.msra.mxu0 0.0
        %405 = vmatprep.subr.mxu0 0.0
        %406 = vmatpush1.msra.mxu0 0.0
        %407 = vmatprep.subr.mxu0 0.0
        %408 = vmatpush1.msra.mxu0 0.0
        %409 = vmatprep.subr.mxu0 0.0
        %410 = vmatpush1.msra.mxu0 0.0
        %411 = vmatprep.subr.mxu0 0.0
        %412 = vmatpush1.msra.mxu0 0.0
        %413 = vmatprep.subr.mxu0 0.0
        %414 = vmatpush1.msra.mxu0 0.0
        %415 = vmatprep.subr.mxu0 0.0
        %416 = vmatpush1.msra.mxu0 0.0
        %417 = vmatprep.subr.mxu0 0.0
        %418 = vmatpush1.msra.mxu0 0.0
        %419 = vmatprep.subr.mxu0 0.0
        %420 = vmatpush1.msra.mxu0 0.0
        %421 = vmatprep.subr.mxu0 0.0
        %422 = vmatpush1.msra.mxu0 0.0
        %423 = vmatprep.subr.mxu0 0.0
        %424 = vmatpush1.msra.mxu0 0.0
        %425 = vmatprep.subr.mxu0 0.0
        %426 = vmatpush1.msra.mxu0 0.0
        %427 = vmatprep.subr.mxu0 0.0
        %428 = vmatpush1.msra.mxu0 0.0
        %429 = vmatprep.subr.mxu0 0.0
        %430 = vmatpush1.msra.mxu0 0.0
        %431 = vmatprep.subr.mxu0 0.0
        %432 = vmatpush1.msra.mxu0 0.0
        %433 = vmatprep.mubr.f32.mxu0 0.0
        %434 = vmatmul.mubr.f32.gmra.mrb[0].mxu0 %v363
        %v435 = vpop.f32.mrb[0].mxu0
        %v436 = vadd.f32 %v359, %v435
        %v437 = vpop.f32.mrb[0].mxu0
        %438 = vdwg.mxu0
        %v439 = vsel %vm365, %v436, 0.0
        %v440 = vrot.slane %v439, 4
        %v441 = vadd.f32 %v439, %v440
        %v442 = vrot.slane %v441, 2
        %v443 = vadd.f32 %v441, %v442
        %v444 = vrot.slane %v443, 1
        %v445 = vadd.f32 %v443, %v444
        %v446 = vrcp.pop 4.0
        %v447 = vmul.f32 %v445, %v446
        %v448 = vsub.f32 %v436, %v447
        %v449 = vmul.f32 %v448, %v448
        %v450 = vsel %vm365, %v449, 0.0
        %v451 = vrot.slane %v450, 4
        %v452 = vadd.f32 %v450, %v451
        %v453 = vrot.slane %v452, 2
        %v454 = vadd.f32 %v452, %v453
        %v455 = vrot.slane %v454, 1
        %v456 = vadd.f32 %v454, %v455
        %v457 = vmul.f32 %v456, %v446
        %v458 = vadd.f32 %v457, 1e-05
        %v459 = vrsqrt.pop %v458
        %v460 = vmul.f32 %v448, %v459
        %v461 = vld [vmem:[%s3] sm:$0xf]
        %463 = vset.pattern.permute.xlu0 0
        %464 = vperm.xlu0 %463, %v461
        %v465 = vpop.permute.xlu0 %464
        %v467 = vmul.f32 %v460, %v465
        %v468 = vld [vmem:[%s4] sm:$0xf]
        %470 = vset.pattern.permute.xlu0 0
        %471 = vperm.xlu0 %470, %v468
        %v472 = vpop.permute.xlu0 %471
        %v474 = vadd.f32 %v467, %v472
        %v475 = vld [vmem:[%s5] sm:$0xff]
        %v476 = vld [vmem:[%s6] sm:$0xff]
        %478 = vset.pattern.permute.xlu0 0
        %479 = vperm.xlu0 %478, %v476
        %v480 = vpop.permute.xlu0 %479
        %v483 = vsel %vm361, %v475, 0
        %v486 = vsel %vm365, %v474, 0
        %488 = vmatprep.subr.mxu0 0.0
        %489 = vmatpush1.msra.mxu0 %v486
        %490 = vmatprep.subr.mxu0 0.0
        %491 = vmatpush1.msra.mxu0 0.0
        %492 = vmatprep.subr.mxu0 0.0
        %493 = vmatpush1.msra.mxu0 0.0
        %494 = vmatprep.subr.mxu0 0.0
        %495 = vmatpush1.msra.mxu0 0.0
        %496 = vmatprep.subr.mxu0 0.0
        %497 = vmatpush1.msra.mxu0 0.0
        %498 = vmatprep.subr.mxu0 0.0
        %499 = vmatpush1.msra.mxu0 0.0
        %500 = vmatprep.subr.mxu0 0.0
        %501 = vmatpush1.msra.mxu0 0.0
        %502 = vmatprep.subr.mxu0 0.0
        %503 = vmatpush1.msra.mxu0 0.0
        %504 = vmatprep.subr.mxu0 0.0
        %505 = vmatpush1.msra.mxu0 0.0
        %506 = vmatprep.subr.mxu0 0.0
        %507 = vmatpush1.msra.mxu0 0.0
        %508 = vmatprep.subr.mxu0 0.0
        %509 = vmatpush1.msra.mxu0 0.0
        %510 = vmatprep.subr.mxu0 0.0
        %511 = vmatpush1.msra.mxu0 0.0
        %512 = vmatprep.subr.mxu0 0.0
        %513 = vmatpush1.msra.mxu0 0.0
        %514 = vmatprep.subr.mxu0 0.0
        %515 = vmatpush1.msra.mxu0 0.0
        %516 = vmatprep.subr.mxu0 0.0
        %517 = vmatpush1.msra.mxu0 0.0
        %518 = vmatprep.subr.mxu0 0.0
        %519 = vmatpush1.msra.mxu0 0.0
        %520 = vmatprep.subr.mxu0 0.0
        %521 = vmatpush1.msra.mxu0 0.0
        %522 = vmatprep.subr.mxu0 0.0
        %523 = vmatpush1.msra.mxu0 0.0
        %524 = vmatprep.subr.mxu0 0.0
        %525 = vmatpush1.msra.mxu0 0.0
        %526 = vmatprep.subr.mxu0 0.0
        %527 = vmatpush1.msra.mxu0 0.0
        %528 = vmatprep.subr.mxu0 0.0
        %529 = vmatpush1.msra.mxu0 0.0
        %530 = vmatprep.subr.mxu0 0.0
        %531 = vmatpush1.msra.mxu0 0.0
        %532 = vmatprep.subr.mxu0 0.0
        %533 = vmatpush1.msra.mxu0 0.0
        %534 = vmatprep.subr.mxu0 0.0
        %535 = vmatpush1.msra.mxu0 0.0
        %536 = vmatprep.subr.mxu0 0.0
        %537 = vmatpush1.msra.mxu0 0.0
        %538 = vmatprep.subr.mxu0 0.0
        %539 = vmatpush1.msra.mxu0 0.0
        %540 = vmatprep.subr.mxu0 0.0
        %541 = vmatpush1.msra.mxu0 0.0
        %542 = vmatprep.subr.mxu0 0.0
        %543 = vmatpush1.msra.mxu0 0.0
        %544 = vmatprep.subr.mxu0 0.0
        %545 = vmatpush1.msra.mxu0 0.0
        %546 = vmatprep.subr.mxu0 0.0
        %547 = vmatpush1.msra.mxu0 0.0
        %548 = vmatprep.subr.mxu0 0.0
        %549 = vmatpush1.msra.mxu0 0.0
        %550 = vmatprep.subr.mxu0 0.0
        %551 = vmatpush1.msra.mxu0 0.0
        %552 = vmatprep.mubr.f32.mxu0 0.0
        %553 = vmatmul.mubr.f32.gmra.mrb[0].mxu0 %v483
        %v554 = vpop.f32.mrb[0].mxu0
        %v555 = vadd.f32 %v480, %v554
        %v556 = vpop.f32.mrb[0].mxu0
        %557 = vdwg.mxu0
        %v558 = vrot.slane %v555, 4
        %v559 = vmax.f32 %v555, %v558
        %v560 = vrot.slane %v559, 2
        %v561 = vmax.f32 %v559, %v560
        %v562 = vrot.slane %v561, 1
        %v563 = vmax.f32 %v561, %v562
        %v564 = vsub.f32 %v555, %v563
        %v565 = vmul.f32 %v564, 1.442695
        %v566 = vpow.pop %v565
        %v567 = vrot.slane %v566, 4
        %v568 = vadd.f32 %v566, %v567
        %v569 = vrot.slane %v568, 2
        %v570 = vadd.f32 %v568, %v569
        %v571 = vrot.slane %v570, 1
        %v572 = vadd.f32 %v570, %v571
        %v573 = vrcp.pop %v572
        %v574 = vmul.f32 %v566, %v573
        %v575 = vmul.f32 %v555, %v574
        %v576 = vmul.f32 %v575, %v575
        %v577 = vrot.slane %v576, 4
        %v578 = vadd.f32 %v576, %v577
        %v579 = vrot.slane %v578, 2
        %v580 = vadd.f32 %v578, %v579
        %v581 = vrot.slane %v580, 1
        %v582 = vadd.f32 %v580, %v581
        %v583 = vmax.f32 %v582, 1e-24
        %v584 = vrsqrt.pop %v583
        %v585 = vld [vmem:[%s7] sm:$0xff]
        %587 = vset.pattern.permute.xlu0 0
        %588 = vperm.xlu0 %587, %v585
        %v589 = vpop.permute.xlu0 %588
        %v591 = vmul.f32 %v575, %v589
        %v592 = vrot.slane %v591, 4
        %v593 = vadd.f32 %v591, %v592
        %v594 = vrot.slane %v593, 2
        %v595 = vadd.f32 %v593, %v594
        %v596 = vrot.slane %v595, 1
        %v597 = vadd.f32 %v595, %v596
        %v598 = vmul.f32 %v597, %v584
        %v599 = vmax.f32 %v598, 0.0
        %v600 = vmin.f32 %v599, 1.0
        %v601 = vmul.f32 %v575, %v600
        %v602 = vld [vmem:[%s8] sm:$0xff]
        %vm603 = vcmask 64512
        %v605 = vsel %vm603, %v602, 0
        %607 = vmatprep.subr.mxu0 0.0
        %608 = vmatpush1.msra.mxu0 %v601
        %609 = vmatprep.subr.mxu0 0.0
        %610 = vmatpush1.msra.mxu0 0.0
        %611 = vmatprep.subr.mxu0 0.0
        %612 = vmatpush1.msra.mxu0 0.0
        %613 = vmatprep.subr.mxu0 0.0
        %614 = vmatpush1.msra.mxu0 0.0
        %615 = vmatprep.subr.mxu0 0.0
        %616 = vmatpush1.msra.mxu0 0.0
        %617 = vmatprep.subr.mxu0 0.0
        %618 = vmatpush1.msra.mxu0 0.0
        %619 = vmatprep.subr.mxu0 0.0
        %620 = vmatpush1.msra.mxu0 0.0
        %621 = vmatprep.subr.mxu0 0.0
        %622 = vmatpush1.msra.mxu0 0.0
        %623 = vmatprep.subr.mxu0 0.0
        %624 = vmatpush1.msra.mxu0 0.0
        %625 = vmatprep.subr.mxu0 0.0
        %626 = vmatpush1.msra.mxu0 0.0
        %627 = vmatprep.subr.mxu0 0.0
        %628 = vmatpush1.msra.mxu0 0.0
        %629 = vmatprep.subr.mxu0 0.0
        %630 = vmatpush1.msra.mxu0 0.0
        %631 = vmatprep.subr.mxu0 0.0
        %632 = vmatpush1.msra.mxu0 0.0
        %633 = vmatprep.subr.mxu0 0.0
        %634 = vmatpush1.msra.mxu0 0.0
        %635 = vmatprep.subr.mxu0 0.0
        %636 = vmatpush1.msra.mxu0 0.0
        %637 = vmatprep.subr.mxu0 0.0
        %638 = vmatpush1.msra.mxu0 0.0
        %639 = vmatprep.subr.mxu0 0.0
        %640 = vmatpush1.msra.mxu0 0.0
        %641 = vmatprep.subr.mxu0 0.0
        %642 = vmatpush1.msra.mxu0 0.0
        %643 = vmatprep.subr.mxu0 0.0
        %644 = vmatpush1.msra.mxu0 0.0
        %645 = vmatprep.subr.mxu0 0.0
        %646 = vmatpush1.msra.mxu0 0.0
        %647 = vmatprep.subr.mxu0 0.0
        %648 = vmatpush1.msra.mxu0 0.0
        %649 = vmatprep.subr.mxu0 0.0
        %650 = vmatpush1.msra.mxu0 0.0
        %651 = vmatprep.subr.mxu0 0.0
        %652 = vmatpush1.msra.mxu0 0.0
        %653 = vmatprep.subr.mxu0 0.0
        %654 = vmatpush1.msra.mxu0 0.0
        %655 = vmatprep.subr.mxu0 0.0
        %656 = vmatpush1.msra.mxu0 0.0
        %657 = vmatprep.subr.mxu0 0.0
        %658 = vmatpush1.msra.mxu0 0.0
        %659 = vmatprep.subr.mxu0 0.0
        %660 = vmatpush1.msra.mxu0 0.0
        %661 = vmatprep.subr.mxu0 0.0
        %662 = vmatpush1.msra.mxu0 0.0
        %663 = vmatprep.subr.mxu0 0.0
        %664 = vmatpush1.msra.mxu0 0.0
        %665 = vmatprep.subr.mxu0 0.0
        %666 = vmatpush1.msra.mxu0 0.0
        %667 = vmatprep.subr.mxu0 0.0
        %668 = vmatpush1.msra.mxu0 0.0
        %669 = vmatprep.subr.mxu0 0.0
        %670 = vmatpush1.msra.mxu0 0.0
        %671 = vmatprep.mubr.f32.mxu0 0.0
        %672 = vmatmul.mubr.f32.gmra.mrb[0].mxu0 %v605
        %v673 = vpop.f32.mrb[0].mxu0
        %v674 = vadd.f32 0.0, %v673
        %v675 = vpop.f32.mrb[0].mxu0
        %676 = vdwg.mxu0
        %677 = vst [vmem:[%s345] sm:$0xff] %v674
        %s678 = sand.u32 %s241, 1
        %s679 = scalar_lea.sflag [#allocation3], %s678
        %s680 = sand.u32 %s241, 1
        %s681 = smul.addr %s680, 8
        %s682 = scalar_lea.vmem [#allocation2], %s681
        // Predicated region
        $region57: #{tpu_custom_call.1} parent=55 // pred_check
          %p683 = pneg %p251
        $region58: #{tpu_custom_call.1} parent=55 // pred_check_branch
          %685 = sbr.rel (%p683) target = $region60
        $region59: #{tpu_custom_call.1} parent=55 // pred_region
          %s687 = ssub.s32 128, 128
          %688 = vsyncadd %s679, %s687
          %s689 = sadd.s32 %s28, %s27
          %s690 = smul.addr %s689, 128
          %s691 = scalar_lea.hbm %s9, %s690
          %s693 = sshll.u32 %s682, 4
          %s694 = int_to_ptr.vmem [resolvable:$true] %s693
          %696 = dma.vmem_to_hbm [thread:$0]  %s694, 128, %s691, %s679
        $region60: #{tpu_custom_call.1} parent=55 // pred_fallthru
          _
      $region56: #{tpu_custom_call.1} parent=5 // pred_fallthru
        _
      %p697 = scmp.le.s32.totalorder 2, %s18
      // Predicated region
      $region61: #{tpu_custom_call.1} parent=5 // pred_check
        %p698 = pneg %p697
      $region62: #{tpu_custom_call.1} parent=5 // pred_check_branch
        %700 = sbr.rel (%p698) target = $region64
      $region63: #{tpu_custom_call.1} parent=5 // pred_region
        %s701 = ssub.s32 %s18, 2
        // Predicated region
        $region65: #{tpu_custom_call.1} parent=63 // pred_check
          %p702 = pneg %p257
        $region66: #{tpu_custom_call.1} parent=63 // pred_check_branch
          %704 = sbr.rel (%p702) target = $region68
        $region67: #{tpu_custom_call.1} parent=63 // pred_region
          %s705 = sand.u32 %s242, 1
          %s706 = scalar_lea.sflag [#allocation3], %s705
          %s707 = sand.u32 %s242, 1
          %s708 = smul.addr %s707, 8
          %s709 = scalar_lea.vmem [#allocation2], %s708
          %710 = dma.done %s706, 128
        $region68: #{tpu_custom_call.1} parent=63 // pred_fallthru
          _
      $region64: #{tpu_custom_call.1} parent=5 // pred_fallthru
        _
    $region6: #{tpu_custom_call.1} parent=1 // loop_footer
      %s22 = sadd.s32 1, %s18
    $region7: #{tpu_custom_call.1} parent=1 // loop_footer_branch
      %17 = sbr.rel target = $region3
    $region8: #{tpu_custom_call.1} parent=1 // loop_exit
      _
    %711 = vsyncpa [#allocation3], 1
    %s712 = scalar_lea.sflag [#allocation3], 1
    %713 = vsyncpa %s712, 1

</llo_original>
